<compile_context>
chip_gen: v7x
topology: tpu7x:2x2x1
jax: 0.10.0
libtpu: 0.0.40
codegen_flags: <defaults>
</compile_context>

<pallas_src>
import jax
import jax.numpy as jnp
from jax.experimental import pallas as pl
from jax.experimental.pallas import tpu as pltpu


def _round_up(n, m):
    return ((n + m - 1) // m) * m


def _physical_vmem_bytes():
    try:
        return int(pltpu.get_tpu_info().vmem_capacity_bytes)
    except Exception:
        return 64 << 20  # conservative fallback: v7x per-TensorCore VMEM


def decoder2_kernel(z_ref, w1_ref, b1_ref, w2_ref, b2_ref, w3_ref, b3_ref, mu_ref):
    # z_ref: (TB, Mp) tile; weights/biases are full (lane-padded) arrays,
    # VMEM-resident across all grid steps.
    z = z_ref[...]

    h = jnp.dot(z, w1_ref[...], preferred_element_type=jnp.float32) + b1_ref[...]
    # ReLU commutes with the monotonic downcast -> run it on half-width vregs.
    h = jnp.maximum(h.astype(w2_ref.dtype), 0)

    h = jnp.dot(h, w2_ref[...], preferred_element_type=jnp.float32) + b2_ref[...]
    h = jnp.maximum(h.astype(w3_ref.dtype), 0)

    mu = jnp.dot(h, w3_ref[...], preferred_element_type=jnp.float32) + b3_ref[...]
    mu_ref[...] = jnp.tanh(mu).astype(mu_ref.dtype)


def decoder2_forward(z, params, *, max_batch_tile=1024,
                     compute_dtype=jnp.bfloat16, out_dtype=jnp.float32):
    """z: (B, M) float32. Returns (mu: (B, D) out_dtype, std: (1,) float32)."""
    B, M = z.shape
    w1, b1 = params["w1"], params["b1"]          # (M, 2H), (1, 2H)
    w2, b2 = params["w2"], params["b2"]          # (2H, H), (1, H)
    w3, b3 = params["w3"], params["b3"]          # (H, D),  (1, D)
    H2, H, D = w1.shape[1], w2.shape[1], w3.shape[1]

    cdt = jnp.dtype(compute_dtype)
    wsize = cdt.itemsize
    out_size = jnp.dtype(out_dtype).itemsize
    row_align = 16 if cdt == jnp.dtype(jnp.bfloat16) else 8

    # Lane-dense padding of every matmul output dim (zero pads -> exact results)
    # and sublane-aligned padding of the layer-1 contraction dim M.
    Mp = _round_up(M, row_align)
    H2p = _round_up(H2, 128)
    Hp = _round_up(H, 128)
    Dp = _round_up(D, 128)

    def pad2(a, rows, cols, dtype):
        a = a.astype(jnp.float32)
        a = jnp.pad(a, ((0, rows - a.shape[0]), (0, cols - a.shape[1])))
        return a.astype(dtype)

    # Weights in compute_dtype (bf16 default: MXU-native on v5e/v6e/v7x);
    # biases stay f32 (added to the f32 accumulator).
    w1p = pad2(w1, Mp, H2p, compute_dtype)
    w2p = pad2(w2, H2p, Hp, compute_dtype)
    w3p = pad2(w3, Hp, Dp, compute_dtype)
    b1p = pad2(b1, 1, H2p, jnp.float32)
    b2p = pad2(b2, 1, Hp, jnp.float32)
    b3p = pad2(b3, 1, Dp, jnp.float32)

    # Batch tiling: balance tiles to minimize padding waste, and aim for at
    # least 2 grid steps so the "parallel" batch axis can shard across v7x's
    # two TensorCores (no-op on single-TC v5e/v6e, tiny batches stay 1 tile).
    n_tiles = max(1, min(pl.cdiv(B, row_align),
                         max(2, pl.cdiv(B, max_batch_tile))))
    TB = _round_up(pl.cdiv(B, n_tiles), row_align)
    Bp = _round_up(B, TB)
    grid = (Bp // TB,)

    zp = pad2(z, Bp, Mp, compute_dtype)

    # VMEM accounting: resident weights (worst case double-buffered), double-
    # buffered z/mu tiles, and the f32 intermediate activations the compiler
    # materializes for layers 1 and 2.  Clamp to ~90% of physical VMEM.
    weights_bytes = wsize * (Mp * H2p + H2p * Hp + Hp * Dp) + 4 * (H2p + Hp + Dp)
    io_bytes = 2 * (wsize * TB * Mp + out_size * TB * Dp)
    act_bytes = 4 * TB * (H2p + Hp)
    vmem_needed = 2 * weights_bytes + io_bytes + act_bytes
    vmem_limit = int(min(max(vmem_needed + (4 << 20), 16 << 20),
                         int(0.9 * _physical_vmem_bytes())))

    cost = pl.CostEstimate(
        flops=2 * Bp * (Mp * H2p + H2p * Hp + Hp * Dp),
        transcendentals=Bp * Dp,                     # tanh
        bytes_accessed=wsize * Bp * Mp + out_size * Bp * Dp + weights_bytes,
    )

    def run(single_buffer_weights):
        # Grid-invariant weight/bias blocks: request single-buffering to halve
        # their resident VMEM footprint (matters on v7x's 64 MiB).
        const_kw = ({"pipeline_mode": pl.Buffered(1)}
                    if single_buffer_weights else {})
        full = lambda i: (0, 0)
        in_specs = [
            pl.BlockSpec((TB, Mp), lambda i: (i, 0)),      # z tile (streams)
            pl.BlockSpec((Mp, H2p), full, **const_kw),     # w1 (resident)
            pl.BlockSpec((1, H2p), full, **const_kw),      # b1
            pl.BlockSpec((H2p, Hp), full, **const_kw),     # w2
            pl.BlockSpec((1, Hp), full, **const_kw),       # b2
            pl.BlockSpec((Hp, Dp), full, **const_kw),      # w3
            pl.BlockSpec((1, Dp), full, **const_kw),       # b3
        ]
        out_specs = pl.BlockSpec((TB, Dp), lambda i: (i, 0))
        return pl.pallas_call(
            decoder2_kernel,
            out_shape=jax.ShapeDtypeStruct((Bp, Dp), out_dtype),
            grid=grid,
            in_specs=in_specs,
            out_specs=out_specs,
            compiler_params=pltpu.CompilerParams(
                dimension_semantics=("parallel",),
                vmem_limit_bytes=vmem_limit,
            ),
            cost_estimate=cost,
        )(zp, w1p, b1p, w2p, b2p, w3p, b3p)

    try:
        mu_padded = run(True)    # single-buffer the constant weight blocks
    except Exception:
        mu_padded = run(False)   # fall back to default double-buffering

    mu = mu_padded[:B, :D]
    # std = exp(log_scale): data-independent scalar; computed in the wrapper.
    std = jnp.exp(params["log_scale"].astype(jnp.float32))
    return mu, std


def init_params(key, M, H, D):
    """Deterministic synthetic parameters. Weights stored as (in, out)."""
    ks = jax.random.split(key, 6)
    s = 0.1
    return {
        "w1": s * jax.random.normal(ks[0], (M, 2 * H), jnp.float32),
        "b1": s * jax.random.normal(ks[1], (1, 2 * H), jnp.float32),
        "w2": s * jax.random.normal(ks[2], (2 * H, H), jnp.float32),
        "b2": s * jax.random.normal(ks[3], (1, H), jnp.float32),
        "w3": s * jax.random.normal(ks[4], (H, D), jnp.float32),
        "b3": s * jax.random.normal(ks[5], (1, D), jnp.float32),
        "log_scale": jnp.zeros((1,), jnp.float32),   # PyTorch: nn.Parameter([0.0])
    }


def reference_forward(z, params):
    """Pure-JAX reference mirroring the PyTorch Decoder2.forward exactly."""
    h = jnp.maximum(z @ params["w1"] + params["b1"], 0.0)
    h = jnp.maximum(h @ params["w2"] + params["b2"], 0.0)
    mu = jnp.tanh(h @ params["w3"] + params["b3"])
    std = jnp.exp(params["log_scale"])
    return mu, std


if __name__ == "__main__":
    B, M, H, D = 8, 16, 32, 64   # small shapes; Z: (B, M), mu: (B, D)

    key = jax.random.PRNGKey(0)
    kz, kp = jax.random.split(key)
    z = jax.random.normal(kz, (B, M), jnp.float32)
    params = init_params(kp, M, H, D)

    mu_ref, std_ref = reference_forward(z, params)

    # Default path: bf16 MXU operands, f32 accumulation (loose tolerance).
    mu, std = decoder2_forward(z, params)
    jax.block_until_ready((mu, std))
    assert mu.shape == (B, D) and std.shape == (1,)
    assert mu.dtype == jnp.float32
    assert jnp.allclose(mu, mu_ref, atol=5e-2, rtol=5e-2)
    assert jnp.allclose(std, std_ref, atol=1e-6, rtol=1e-6)

    # Exact f32 path (tight tolerance).
    mu32, _ = decoder2_forward(z, params, compute_dtype=jnp.float32)
    jax.block_until_ready(mu32)
    assert jnp.allclose(mu32, mu_ref, atol=1e-5, rtol=1e-5)

    # Multi-tile batch (exercises grid >= 2, batch padding + slicing).
    B2 = 40
    z2 = jax.random.normal(jax.random.PRNGKey(1), (B2, M), jnp.float32)
    mu2, _ = decoder2_forward(z2, params, compute_dtype=jnp.float32,
                              max_batch_tile=16)
    jax.block_until_ready(mu2)
    mu2_ref, _ = reference_forward(z2, params)
    assert mu2.shape == (B2, D)
    assert jnp.allclose(mu2, mu2_ref, atol=1e-5, rtol=1e-5)

    print("KERNEL_OK")
</pallas_src>

<mosaic_0001>
module attributes {stable_mosaic.version = 11 : i64} {
  func.func @decoder2_kernel(%arg0: i32, %arg1: memref<16x16xbf16, #tpu.memory_space<vmem>>, %arg2: memref<16x128xbf16, #tpu.memory_space<vmem>>, %arg3: memref<1x128xf32, #tpu.memory_space<vmem>>, %arg4: memref<128x128xbf16, #tpu.memory_space<vmem>>, %arg5: memref<1x128xf32, #tpu.memory_space<vmem>>, %arg6: memref<128x128xbf16, #tpu.memory_space<vmem>>, %arg7: memref<1x128xf32, #tpu.memory_space<vmem>>, %arg8: memref<16x128xf32, #tpu.memory_space<vmem>>) attributes {dimension_semantics = [#tpu.dimension_semantics<parallel>], iteration_bounds = array<i64: 1>, scalar_prefetch = 0 : i64, scratch_operands = 0 : i64, tpu.core_type = #tpu.core_type<tc>, window_params = [{transform_indices = @transform_0, window_bounds = array<i64: 16, 16>}, {pipeline_mode = #tpu.pipeline_mode<synchronous>, transform_indices = @transform_1, window_bounds = array<i64: 16, 128>}, {pipeline_mode = #tpu.pipeline_mode<synchronous>, transform_indices = @transform_2, window_bounds = array<i64: 1, 128>}, {pipeline_mode = #tpu.pipeline_mode<synchronous>, transform_indices = @transform_3, window_bounds = array<i64: 128, 128>}, {pipeline_mode = #tpu.pipeline_mode<synchronous>, transform_indices = @transform_4, window_bounds = array<i64: 1, 128>}, {pipeline_mode = #tpu.pipeline_mode<synchronous>, transform_indices = @transform_5, window_bounds = array<i64: 128, 128>}, {pipeline_mode = #tpu.pipeline_mode<synchronous>, transform_indices = @transform_6, window_bounds = array<i64: 1, 128>}, {transform_indices = @transform_7, window_bounds = array<i64: 16, 128>}]} {
    %c0 = arith.constant 0 : index
    %c0_0 = arith.constant 0 : index
    %0 = vector.load %arg1[%c0, %c0_0] : memref<16x16xbf16, #tpu.memory_space<vmem>>, vector<16x16xbf16>
    %c0_1 = arith.constant 0 : index
    %c0_2 = arith.constant 0 : index
    %1 = vector.load %arg2[%c0_1, %c0_2] : memref<16x128xbf16, #tpu.memory_space<vmem>>, vector<16x128xbf16>
    %cst = arith.constant dense<0.000000e+00> : vector<16x128xf32>
    %2 = tpu.matmul %0, %1, %cst {dimension_numbers = #tpu.dot_dimension_numbers<[1], [0], [0], [1], [0, 0, 1, 1], [], []>} : vector<16x16xbf16>, vector<16x128xbf16>, vector<16x128xf32> -> vector<16x128xf32>
    %c0_3 = arith.constant 0 : index
    %c0_4 = arith.constant 0 : index
    %3 = vector.load %arg3[%c0_3, %c0_4] : memref<1x128xf32, #tpu.memory_space<vmem>>, vector<1x128xf32>
    %4 = vector.broadcast %3 : vector<1x128xf32> to vector<16x128xf32>
    %5 = arith.addf %2, %4 : vector<16x128xf32>
    %6 = arith.truncf %5 : vector<16x128xf32> to vector<16x128xbf16>
    %cst_5 = arith.constant 0.000000e+00 : bf16
    %7 = vector.broadcast %cst_5 : bf16 to vector<16x128xbf16>
    %8 = arith.maximumf %6, %7 : vector<16x128xbf16>
    %c0_6 = arith.constant 0 : index
    %c0_7 = arith.constant 0 : index
    %9 = vector.load %arg4[%c0_6, %c0_7] : memref<128x128xbf16, #tpu.memory_space<vmem>>, vector<128x128xbf16>
    %cst_8 = arith.constant dense<0.000000e+00> : vector<16x128xf32>
    %10 = tpu.matmul %8, %9, %cst_8 {dimension_numbers = #tpu.dot_dimension_numbers<[1], [0], [0], [1], [0, 0, 1, 1], [], []>} : vector<16x128xbf16>, vector<128x128xbf16>, vector<16x128xf32> -> vector<16x128xf32>
    %c0_9 = arith.constant 0 : index
    %c0_10 = arith.constant 0 : index
    %11 = vector.load %arg5[%c0_9, %c0_10] : memref<1x128xf32, #tpu.memory_space<vmem>>, vector<1x128xf32>
    %12 = vector.broadcast %11 : vector<1x128xf32> to vector<16x128xf32>
    %13 = arith.addf %10, %12 : vector<16x128xf32>
    %14 = arith.truncf %13 : vector<16x128xf32> to vector<16x128xbf16>
    %cst_11 = arith.constant 0.000000e+00 : bf16
    %15 = vector.broadcast %cst_11 : bf16 to vector<16x128xbf16>
    %16 = arith.maximumf %14, %15 : vector<16x128xbf16>
    %c0_12 = arith.constant 0 : index
    %c0_13 = arith.constant 0 : index
    %17 = vector.load %arg6[%c0_12, %c0_13] : memref<128x128xbf16, #tpu.memory_space<vmem>>, vector<128x128xbf16>
    %cst_14 = arith.constant dense<0.000000e+00> : vector<16x128xf32>
    %18 = tpu.matmul %16, %17, %cst_14 {dimension_numbers = #tpu.dot_dimension_numbers<[1], [0], [0], [1], [0, 0, 1, 1], [], []>} : vector<16x128xbf16>, vector<128x128xbf16>, vector<16x128xf32> -> vector<16x128xf32>
    %c0_15 = arith.constant 0 : index
    %c0_16 = arith.constant 0 : index
    %19 = vector.load %arg7[%c0_15, %c0_16] : memref<1x128xf32, #tpu.memory_space<vmem>>, vector<1x128xf32>
    %20 = vector.broadcast %19 : vector<1x128xf32> to vector<16x128xf32>
    %21 = arith.addf %18, %20 : vector<16x128xf32>
    %22 = math.tanh %21 : vector<16x128xf32>
    %c0_17 = arith.constant 0 : index
    %c0_18 = arith.constant 0 : index
    %23 = vector.load %arg8[%c0_17, %c0_18] : memref<16x128xf32, #tpu.memory_space<vmem>>, vector<16x128xf32>
    tpu.vector_store %arg8[%c0_17, %c0_18], %22 {strides = array<i32>} : memref<16x128xf32, #tpu.memory_space<vmem>>, vector<16x128xf32>,
    return
  }
  func.func @transform_0(%arg0: i32) -> (i32, i32) {
    %c0_i32 = arith.constant 0 : i32
    %c0_i32_0 = arith.constant 0 : i32
    return %arg0, %c0_i32 : i32, i32
  }
  func.func @transform_1(%arg0: i32) -> (i32, i32) {
    %c0_i32 = arith.constant 0 : i32
    %c0_i32_0 = arith.constant 0 : i32
    %c0_i32_1 = arith.constant 0 : i32
    return %c0_i32, %c0_i32_0 : i32, i32
  }
  func.func @transform_2(%arg0: i32) -> (i32, i32) {
    %c0_i32 = arith.constant 0 : i32
    %c0_i32_0 = arith.constant 0 : i32
    %c0_i32_1 = arith.constant 0 : i32
    return %c0_i32, %c0_i32_0 : i32, i32
  }
  func.func @transform_3(%arg0: i32) -> (i32, i32) {
    %c0_i32 = arith.constant 0 : i32
    %c0_i32_0 = arith.constant 0 : i32
    %c0_i32_1 = arith.constant 0 : i32
    return %c0_i32, %c0_i32_0 : i32, i32
  }
  func.func @transform_4(%arg0: i32) -> (i32, i32) {
    %c0_i32 = arith.constant 0 : i32
    %c0_i32_0 = arith.constant 0 : i32
    %c0_i32_1 = arith.constant 0 : i32
    return %c0_i32, %c0_i32_0 : i32, i32
  }
  func.func @transform_5(%arg0: i32) -> (i32, i32) {
    %c0_i32 = arith.constant 0 : i32
    %c0_i32_0 = arith.constant 0 : i32
    %c0_i32_1 = arith.constant 0 : i32
    return %c0_i32, %c0_i32_0 : i32, i32
  }
  func.func @transform_6(%arg0: i32) -> (i32, i32) {
    %c0_i32 = arith.constant 0 : i32
    %c0_i32_0 = arith.constant 0 : i32
    %c0_i32_1 = arith.constant 0 : i32
    return %c0_i32, %c0_i32_0 : i32, i32
  }
  func.func @transform_7(%arg0: i32) -> (i32, i32) {
    %c0_i32 = arith.constant 0 : i32
    %c0_i32_0 = arith.constant 0 : i32
    return %arg0, %c0_i32 : i32, i32
  }
}

module attributes {stable_mosaic.version = 11 : i64} {
  func.func @decoder2_kernel(%arg0: i32, %arg1: memref<16x16xbf16, #tpu.memory_space<vmem>>, %arg2: memref<16x128xbf16, #tpu.memory_space<vmem>>, %arg3: memref<1x128xf32, #tpu.memory_space<vmem>>, %arg4: memref<128x128xbf16, #tpu.memory_space<vmem>>, %arg5: memref<1x128xf32, #tpu.memory_space<vmem>>, %arg6: memref<128x128xbf16, #tpu.memory_space<vmem>>, %arg7: memref<1x128xf32, #tpu.memory_space<vmem>>, %arg8: memref<16x128xf32, #tpu.memory_space<vmem>>) attributes {dimension_semantics = [#tpu.dimension_semantics<parallel>], iteration_bounds = array<i64: 1>, scalar_prefetch = 0 : i64, scratch_operands = 0 : i64, tpu.core_type = #tpu.core_type<tc>, window_params = [{transform_indices = @transform_0, window_bounds = array<i64: 16, 16>}, {pipeline_mode = #tpu.pipeline_mode<synchronous>, transform_indices = @transform_1, window_bounds = array<i64: 16, 128>}, {pipeline_mode = #tpu.pipeline_mode<synchronous>, transform_indices = @transform_2, window_bounds = array<i64: 1, 128>}, {pipeline_mode = #tpu.pipeline_mode<synchronous>, transform_indices = @transform_3, window_bounds = array<i64: 128, 128>}, {pipeline_mode = #tpu.pipeline_mode<synchronous>, transform_indices = @transform_4, window_bounds = array<i64: 1, 128>}, {pipeline_mode = #tpu.pipeline_mode<synchronous>, transform_indices = @transform_5, window_bounds = array<i64: 128, 128>}, {pipeline_mode = #tpu.pipeline_mode<synchronous>, transform_indices = @transform_6, window_bounds = array<i64: 1, 128>}, {transform_indices = @transform_7, window_bounds = array<i64: 16, 128>}]} {
    %c0 = arith.constant 0 : index
    %c0_0 = arith.constant 0 : index
    %0 = vector.load %arg1[%c0, %c0_0] : memref<16x16xbf16, #tpu.memory_space<vmem>>, vector<16x16xbf16>
    %c0_1 = arith.constant 0 : index
    %c0_2 = arith.constant 0 : index
    %1 = vector.load %arg2[%c0_1, %c0_2] : memref<16x128xbf16, #tpu.memory_space<vmem>>, vector<16x128xbf16>
    %cst = arith.constant dense<0.000000e+00> : vector<16x128xf32>
    %2 = tpu.matmul %0, %1, %cst {dimension_numbers = #tpu.dot_dimension_numbers<[1], [0], [0], [1], [0, 0, 1, 1], [], []>} : vector<16x16xbf16>, vector<16x128xbf16>, vector<16x128xf32> -> vector<16x128xf32>
    %c0_3 = arith.constant 0 : index
    %c0_4 = arith.constant 0 : index
    %3 = vector.load %arg3[%c0_3, %c0_4] : memref<1x128xf32, #tpu.memory_space<vmem>>, vector<1x128xf32>
    %4 = vector.broadcast %3 : vector<1x128xf32> to vector<16x128xf32>
    %5 = arith.addf %2, %4 : vector<16x128xf32>
    %6 = arith.truncf %5 : vector<16x128xf32> to vector<16x128xbf16>
    %cst_5 = arith.constant 0.000000e+00 : bf16
    %7 = vector.broadcast %cst_5 : bf16 to vector<16x128xbf16>
    %8 = arith.maximumf %6, %7 : vector<16x128xbf16>
    %c0_6 = arith.constant 0 : index
    %c0_7 = arith.constant 0 : index
    %9 = vector.load %arg4[%c0_6, %c0_7] : memref<128x128xbf16, #tpu.memory_space<vmem>>, vector<128x128xbf16>
    %cst_8 = arith.constant dense<0.000000e+00> : vector<16x128xf32>
    %10 = tpu.matmul %8, %9, %cst_8 {dimension_numbers = #tpu.dot_dimension_numbers<[1], [0], [0], [1], [0, 0, 1, 1], [], []>} : vector<16x128xbf16>, vector<128x128xbf16>, vector<16x128xf32> -> vector<16x128xf32>
    %c0_9 = arith.constant 0 : index
    %c0_10 = arith.constant 0 : index
    %11 = vector.load %arg5[%c0_9, %c0_10] : memref<1x128xf32, #tpu.memory_space<vmem>>, vector<1x128xf32>
    %12 = vector.broadcast %11 : vector<1x128xf32> to vector<16x128xf32>
    %13 = arith.addf %10, %12 : vector<16x128xf32>
    %14 = arith.truncf %13 : vector<16x128xf32> to vector<16x128xbf16>
    %cst_11 = arith.constant 0.000000e+00 : bf16
    %15 = vector.broadcast %cst_11 : bf16 to vector<16x128xbf16>
    %16 = arith.maximumf %14, %15 : vector<16x128xbf16>
    %c0_12 = arith.constant 0 : index
    %c0_13 = arith.constant 0 : index
    %17 = vector.load %arg6[%c0_12, %c0_13] : memref<128x128xbf16, #tpu.memory_space<vmem>>, vector<128x128xbf16>
    %cst_14 = arith.constant dense<0.000000e+00> : vector<16x128xf32>
    %18 = tpu.matmul %16, %17, %cst_14 {dimension_numbers = #tpu.dot_dimension_numbers<[1], [0], [0], [1], [0, 0, 1, 1], [], []>} : vector<16x128xbf16>, vector<128x128xbf16>, vector<16x128xf32> -> vector<16x128xf32>
    %c0_15 = arith.constant 0 : index
    %c0_16 = arith.constant 0 : index
    %19 = vector.load %arg7[%c0_15, %c0_16] : memref<1x128xf32, #tpu.memory_space<vmem>>, vector<1x128xf32>
    %20 = vector.broadcast %19 : vector<1x128xf32> to vector<16x128xf32>
    %21 = arith.addf %18, %20 : vector<16x128xf32>
    %22 = math.tanh %21 : vector<16x128xf32>
    %c0_17 = arith.constant 0 : index
    %c0_18 = arith.constant 0 : index
    %23 = vector.load %arg8[%c0_17, %c0_18] : memref<16x128xf32, #tpu.memory_space<vmem>>, vector<16x128xf32>
    tpu.vector_store %arg8[%c0_17, %c0_18], %22 {strides = array<i32>} : memref<16x128xf32, #tpu.memory_space<vmem>>, vector<16x128xf32>,
    return
  }
  func.func @transform_0(%arg0: i32) -> (i32, i32) {
    %c0_i32 = arith.constant 0 : i32
    %c0_i32_0 = arith.constant 0 : i32
    return %arg0, %c0_i32 : i32, i32
  }
  func.func @transform_1(%arg0: i32) -> (i32, i32) {
    %c0_i32 = arith.constant 0 : i32
    %c0_i32_0 = arith.constant 0 : i32
    %c0_i32_1 = arith.constant 0 : i32
    return %c0_i32, %c0_i32_0 : i32, i32
  }
  func.func @transform_2(%arg0: i32) -> (i32, i32) {
    %c0_i32 = arith.constant 0 : i32
    %c0_i32_0 = arith.constant 0 : i32
    %c0_i32_1 = arith.constant 0 : i32
    return %c0_i32, %c0_i32_0 : i32, i32
  }
  func.func @transform_3(%arg0: i32) -> (i32, i32) {
    %c0_i32 = arith.constant 0 : i32
    %c0_i32_0 = arith.constant 0 : i32
    %c0_i32_1 = arith.constant 0 : i32
    return %c0_i32, %c0_i32_0 : i32, i32
  }
  func.func @transform_4(%arg0: i32) -> (i32, i32) {
    %c0_i32 = arith.constant 0 : i32
    %c0_i32_0 = arith.constant 0 : i32
    %c0_i32_1 = arith.constant 0 : i32
    return %c0_i32, %c0_i32_0 : i32, i32
  }
  func.func @transform_5(%arg0: i32) -> (i32, i32) {
    %c0_i32 = arith.constant 0 : i32
    %c0_i32_0 = arith.constant 0 : i32
    %c0_i32_1 = arith.constant 0 : i32
    return %c0_i32, %c0_i32_0 : i32, i32
  }
  func.func @transform_6(%arg0: i32) -> (i32, i32) {
    %c0_i32 = arith.constant 0 : i32
    %c0_i32_0 = arith.constant 0 : i32
    %c0_i32_1 = arith.constant 0 : i32
    return %c0_i32, %c0_i32_0 : i32, i32
  }
  func.func @transform_7(%arg0: i32) -> (i32, i32) {
    %c0_i32 = arith.constant 0 : i32
    %c0_i32_0 = arith.constant 0 : i32
    return %arg0, %c0_i32 : i32, i32
  }
}

</mosaic_0001>

<llo_original>
// kernel: tpu_custom_call.1
$region0: #{tpu_custom_call.1}
  #allocation0 [shape = 'u32[]', space=smem, size = 0x4, offset = 0x4, fixed_abs, tag = 'smem constant byte address 0x4 - core index']
  #allocation1 [shape = 'u32[144,128]{1,0:T(1,128)}', space=vmem, size = 0x12000, scoped, tag = 'internal scratch']
  %s0 = inlined_call_operand.hbm [shape: bf16[16,16], index: 0, kind: input, shape index: {}]
  %s1 = inlined_call_operand.hbm [shape: bf16[16,128], index: 1, kind: input, shape index: {}]
  %s2 = inlined_call_operand.vmem [shape: f32[1,128], index: 2, kind: input, shape index: {}]
  %s3 = inlined_call_operand.hbm [shape: bf16[128,128], index: 3, kind: input, shape index: {}]
  %s4 = inlined_call_operand.vmem [shape: f32[1,128], index: 4, kind: input, shape index: {}]
  %s5 = inlined_call_operand.hbm [shape: bf16[128,128], index: 5, kind: input, shape index: {}]
  %s6 = inlined_call_operand.vmem [shape: f32[1,128], index: 6, kind: input, shape index: {}]
  %s7 = inlined_call_operand.hbm [shape: f32[16,128], index: 7, kind: output, shape index: {}]
  %s8 = sld [smem:[#allocation0]]
  $region54: #{tpu_custom_call.1} parent=0
    _
  %s10 = ssub.s32 1, %s8
  %s11 = scalar_select 0, %s10, %s8
  $region1: #{tpu_custom_call.1} parent=0
    #allocation2 [shape = 'u8[4096]{0}', space=vmem, size = 0x1000, scoped, tag = 'input window, operand 0, single buffered']
    #allocation3 [shape = 's32[1]{0}', space=sflag, size = 0x4, scoped, tag = 'scoped memory for tpu_custom_call.1']
    #allocation4 [shape = 's32[1]{0}', space=sflag, size = 0x4, scoped, tag = 'scoped memory for tpu_custom_call.1']
    #allocation5 [shape = 'u8[4096]{0}', space=vmem, size = 0x1000, scoped, tag = 'input window, operand 1, single buffered']
    #allocation6 [shape = 's32[1]{0}', space=sflag, size = 0x4, scoped, tag = 'scoped memory for tpu_custom_call.1']
    #allocation7 [shape = 'u8[32768]{0}', space=vmem, size = 0x8000, scoped, tag = 'input window, operand 3, single buffered']
    #allocation8 [shape = 'u8[32768]{0}', space=vmem, size = 0x8000, scoped, tag = 'input window, operand 5, single buffered']
    #allocation9 [shape = 's32[1]{0}', space=sflag, size = 0x4, scoped, tag = 'scoped memory for tpu_custom_call.1']
    #allocation10 [shape = 'u8[8192]{0}', space=vmem, size = 0x2000, scoped, tag = 'output window, operand 0, single buffered']
    %12 = vsyncpa [#allocation3], 0
    %13 = vsyncpa [#allocation6], 0
    %14 = vsyncpa [#allocation9], 0
    %15 = vsyncpa [#allocation4], 0
    // Predicated region
    $region2: #{tpu_custom_call.1} parent=1 // pred_check
      _
    $region3: #{tpu_custom_call.1} parent=1 // pred_check_branch
      %17 = sbr.rel (0) target = $region5
    $region4: #{tpu_custom_call.1} parent=1 // pred_region
      %s19 = ssub.s32 128, 128
      %20 = vsyncadd [#allocation3], %s19
      %s21 = sshll.u32 [#allocation2], 4
      %s22 = int_to_ptr.vmem [resolvable:$true] %s21
      %27 = dma.hbm_to_vmem [thread:$0]  %s0, 128, %s22, [#allocation3], 64, 64, 4
    $region5: #{tpu_custom_call.1} parent=1 // pred_fallthru
      _
    // Predicated region
    $region6: #{tpu_custom_call.1} parent=1 // pred_check
      _
    $region7: #{tpu_custom_call.1} parent=1 // pred_check_branch
      %29 = sbr.rel (0) target = $region9
    $region8: #{tpu_custom_call.1} parent=1 // pred_region
      %s31 = ssub.s32 128, 128
      %32 = vsyncadd [#allocation6], %s31
      %s33 = sshll.u32 [#allocation5], 4
      %s34 = int_to_ptr.vmem [resolvable:$true] %s33
      %39 = dma.hbm_to_vmem [thread:$0]  %s1, 128, %s34, [#allocation6], 64, 64, 4
    $region9: #{tpu_custom_call.1} parent=1 // pred_fallthru
      _
    // Predicated region
    $region10: #{tpu_custom_call.1} parent=1 // pred_check
      _
    $region11: #{tpu_custom_call.1} parent=1 // pred_check_branch
      %41 = sbr.rel (0) target = $region13
    $region12: #{tpu_custom_call.1} parent=1 // pred_region
      _
    $region13: #{tpu_custom_call.1} parent=1 // pred_fallthru
      _
    // Predicated region
    $region14: #{tpu_custom_call.1} parent=1 // pred_check
      _
    $region15: #{tpu_custom_call.1} parent=1 // pred_check_branch
      %43 = sbr.rel (0) target = $region17
    $region16: #{tpu_custom_call.1} parent=1 // pred_region
      %s45 = ssub.s32 1024, 1024
      %46 = vsyncadd [#allocation6], %s45
      %s47 = sshll.u32 [#allocation7], 4
      %s48 = int_to_ptr.vmem [resolvable:$true] %s47
      %53 = dma.hbm_to_vmem [thread:$0]  %s3, 1024, %s48, [#allocation6], 64, 64, 4
    $region17: #{tpu_custom_call.1} parent=1 // pred_fallthru
      _
    // Predicated region
    $region18: #{tpu_custom_call.1} parent=1 // pred_check
      _
    $region19: #{tpu_custom_call.1} parent=1 // pred_check_branch
      %55 = sbr.rel (0) target = $region21
    $region20: #{tpu_custom_call.1} parent=1 // pred_region
      _
    $region21: #{tpu_custom_call.1} parent=1 // pred_fallthru
      _
    // Predicated region
    $region22: #{tpu_custom_call.1} parent=1 // pred_check
      _
    $region23: #{tpu_custom_call.1} parent=1 // pred_check_branch
      %57 = sbr.rel (0) target = $region25
    $region24: #{tpu_custom_call.1} parent=1 // pred_region
      %s59 = ssub.s32 1024, 1024
      %60 = vsyncadd [#allocation9], %s59
      %s61 = sshll.u32 [#allocation8], 4
      %s62 = int_to_ptr.vmem [resolvable:$true] %s61
      %67 = dma.hbm_to_vmem [thread:$0]  %s5, 1024, %s62, [#allocation9], 64, 64, 4
    $region25: #{tpu_custom_call.1} parent=1 // pred_fallthru
      _
    // Predicated region
    $region26: #{tpu_custom_call.1} parent=1 // pred_check
      _
    $region27: #{tpu_custom_call.1} parent=1 // pred_check_branch
      %69 = sbr.rel (0) target = $region29
    $region28: #{tpu_custom_call.1} parent=1 // pred_region
      _
    $region29: #{tpu_custom_call.1} parent=1 // pred_fallthru
      _
    // Predicated region
    $region30: #{tpu_custom_call.1} parent=1 // pred_check
      _
    $region31: #{tpu_custom_call.1} parent=1 // pred_check_branch
      %71 = sbr.rel (0) target = $region33
    $region32: #{tpu_custom_call.1} parent=1 // pred_region
      %72 = dma.done [#allocation3], 128
    $region33: #{tpu_custom_call.1} parent=1 // pred_fallthru
      _
    // Predicated region
    $region34: #{tpu_custom_call.1} parent=1 // pred_check
      _
    $region35: #{tpu_custom_call.1} parent=1 // pred_check_branch
      %74 = sbr.rel (0) target = $region37
    $region36: #{tpu_custom_call.1} parent=1 // pred_region
      %75 = dma.done [#allocation6], 128
    $region37: #{tpu_custom_call.1} parent=1 // pred_fallthru
      _
    // Predicated region
    $region38: #{tpu_custom_call.1} parent=1 // pred_check
      _
    $region39: #{tpu_custom_call.1} parent=1 // pred_check_branch
      %77 = sbr.rel (0) target = $region41
    $region40: #{tpu_custom_call.1} parent=1 // pred_region
      %78 = dma.done [#allocation6], 1024
    $region41: #{tpu_custom_call.1} parent=1 // pred_fallthru
      _
    // Predicated region
    $region42: #{tpu_custom_call.1} parent=1 // pred_check
      _
    $region43: #{tpu_custom_call.1} parent=1 // pred_check_branch
      %80 = sbr.rel (0) target = $region45
    $region44: #{tpu_custom_call.1} parent=1 // pred_region
      %81 = dma.done [#allocation9], 1024
    $region45: #{tpu_custom_call.1} parent=1 // pred_fallthru
      _
    %v83 = vld [vmem:[#allocation2] sm:$0xf]
    %v84 = vld [vmem:[#allocation2 + $0x4] sm:$0xf]
    %v85 = vld [vmem:[#allocation5] sm:$0xf]
    %v86 = vld [vmem:[#allocation5 + $0x4] sm:$0xf]
    %v87 = vld [vmem:[%s2] sm:$0x1]
    %v89 = vlaneseq
    %v90 = vshrl.u32 %v89, 7
    %v91 = vsub.s32 0, %v90
    %v92 = vrot.slane %v87, %v91
    %v96 = vunpack.c.l.b16 %v83
    %v97 = vunpack.c.l.b16 %v84
    %v98 = vpack.c.b16 %v97, %v96
    %v101 = vunpack.c.l.b16 %v85
    %v102 = vunpack.c.l.b16 %v86
    %v103 = vpack.c.b16 %v102, %v101
    %vm105 = vcmask 130048
    %v107 = vsel %vm105, %v98, 0
    %109 = vmatprep.subr.bf16.mxu0 0
    %110 = vmatpush1.bf16.msra.mxu0 %v103
    %111 = vmatprep.subr.bf16.mxu0 0
    %112 = vmatpush1.bf16.msra.mxu0 0
    %113 = vmatprep.subr.bf16.mxu0 0
    %114 = vmatpush1.bf16.msra.mxu0 0
    %115 = vmatprep.subr.bf16.mxu0 0
    %116 = vmatpush1.bf16.msra.mxu0 0
    %117 = vmatprep.subr.bf16.mxu0 0
    %118 = vmatpush1.bf16.msra.mxu0 0
    %119 = vmatprep.subr.bf16.mxu0 0
    %120 = vmatpush1.bf16.msra.mxu0 0
    %121 = vmatprep.subr.bf16.mxu0 0
    %122 = vmatpush1.bf16.msra.mxu0 0
    %123 = vmatprep.subr.bf16.mxu0 0
    %124 = vmatpush1.bf16.msra.mxu0 0
    %125 = vmatprep.subr.bf16.mxu0 0
    %126 = vmatpush1.bf16.msra.mxu0 0
    %127 = vmatprep.subr.bf16.mxu0 0
    %128 = vmatpush1.bf16.msra.mxu0 0
    %129 = vmatprep.subr.bf16.mxu0 0
    %130 = vmatpush1.bf16.msra.mxu0 0
    %131 = vmatprep.subr.bf16.mxu0 0
    %132 = vmatpush1.bf16.msra.mxu0 0
    %133 = vmatprep.subr.bf16.mxu0 0
    %134 = vmatpush1.bf16.msra.mxu0 0
    %135 = vmatprep.subr.bf16.mxu0 0
    %136 = vmatpush1.bf16.msra.mxu0 0
    %137 = vmatprep.subr.bf16.mxu0 0
    %138 = vmatpush1.bf16.msra.mxu0 0
    %139 = vmatprep.subr.bf16.mxu0 0
    %140 = vmatpush1.bf16.msra.mxu0 0
    %141 = vmatprep.mubr.bf16.mxu0 0
    %142 = vmatmul.mubr.bf16.gmra.mrb[0].mxu0 %v107
    %v143 = vpop.f32.mrb[0].mxu0
    %v144 = vadd.f32 %v92, %v143
    %v145 = vpop.f32.mrb[0].mxu0
    %v146 = vpop.f32.mrb[0].mxu0
    %v147 = vadd.f32 %v92, %v146
    %v148 = vpop.f32.mrb[0].mxu0
    %149 = vdwg.mxu0
    %v150 = vpack.c.bf16 %v147, %v144
    %v151 = vmax.bf16 %v150, 0
    %v152 = vld [vmem:[#allocation7] sm:$0xf]
    %v153 = vld [vmem:[#allocation7 + $0x4] sm:$0xf]
    %v154 = vld [vmem:[#allocation7 + $0x8] sm:$0xf]
    %v155 = vld [vmem:[#allocation7 + $0xc] sm:$0xf]
    %v156 = vld [vmem:[#allocation7 + $0x10] sm:$0xf]
    %v157 = vld [vmem:[#allocation7 + $0x14] sm:$0xf]
    %v158 = vld [vmem:[#allocation7 + $0x18] sm:$0xf]
    %v159 = vld [vmem:[#allocation7 + $0x1c] sm:$0xf]
    %v160 = vld [vmem:[#allocation7 + $0x20] sm:$0xf]
    %v161 = vld [vmem:[#allocation7 + $0x24] sm:$0xf]
    %v162 = vld [vmem:[#allocation7 + $0x28] sm:$0xf]
    %v163 = vld [vmem:[#allocation7 + $0x2c] sm:$0xf]
    %v164 = vld [vmem:[#allocation7 + $0x30] sm:$0xf]
    %v165 = vld [vmem:[#allocation7 + $0x34] sm:$0xf]
    %v166 = vld [vmem:[#allocation7 + $0x38] sm:$0xf]
    %v167 = vld [vmem:[#allocation7 + $0x3c] sm:$0xf]
    %v168 = vld [vmem:[%s4] sm:$0x1]
    %v170 = vlaneseq
    %v171 = vshrl.u32 %v170, 7
    %v172 = vsub.s32 0, %v171
    %v173 = vrot.slane %v168, %v172
    %v191 = vunpack.c.l.b16 %v152
    %v192 = vunpack.c.l.b16 %v153
    %v193 = vunpack.c.l.b16 %v154
    %v194 = vunpack.c.l.b16 %v155
    %v195 = vunpack.c.l.b16 %v156
    %v196 = vunpack.c.l.b16 %v157
    %v197 = vunpack.c.l.b16 %v158
    %v198 = vunpack.c.l.b16 %v159
    %v199 = vunpack.c.l.b16 %v160
    %v200 = vunpack.c.l.b16 %v161
    %v201 = vunpack.c.l.b16 %v162
    %v202 = vunpack.c.l.b16 %v163
    %v203 = vunpack.c.l.b16 %v164
    %v204 = vunpack.c.l.b16 %v165
    %v205 = vunpack.c.l.b16 %v166
    %v206 = vunpack.c.l.b16 %v167
    %v207 = vpack.c.b16 %v192, %v191
    %v208 = vpack.c.b16 %v194, %v193
    %v209 = vpack.c.b16 %v196, %v195
    %v210 = vpack.c.b16 %v198, %v197
    %v211 = vpack.c.b16 %v200, %v199
    %v212 = vpack.c.b16 %v202, %v201
    %v213 = vpack.c.b16 %v204, %v203
    %v214 = vpack.c.b16 %v206, %v205
    %223 = vmatprep.subr.bf16.mxu0 0
    %224 = vmatpush1.bf16.msra.mxu0 %v207
    %225 = vmatprep.subr.bf16.mxu0 0
    %226 = vmatpush1.bf16.msra.mxu0 %v208
    %227 = vmatprep.subr.bf16.mxu0 0
    %228 = vmatpush1.bf16.msra.mxu0 %v209
    %229 = vmatprep.subr.bf16.mxu0 0
    %230 = vmatpush1.bf16.msra.mxu0 %v210
    %231 = vmatprep.subr.bf16.mxu0 0
    %232 = vmatpush1.bf16.msra.mxu0 %v211
    %233 = vmatprep.subr.bf16.mxu0 0
    %234 = vmatpush1.bf16.msra.mxu0 %v212
    %235 = vmatprep.subr.bf16.mxu0 0
    %236 = vmatpush1.bf16.msra.mxu0 %v213
    %237 = vmatprep.subr.bf16.mxu0 0
    %238 = vmatpush1.bf16.msra.mxu0 %v214
    %239 = vmatprep.subr.bf16.mxu0 0
    %240 = vmatpush1.bf16.msra.mxu0 0
    %241 = vmatprep.subr.bf16.mxu0 0
    %242 = vmatpush1.bf16.msra.mxu0 0
    %243 = vmatprep.subr.bf16.mxu0 0
    %244 = vmatpush1.bf16.msra.mxu0 0
    %245 = vmatprep.subr.bf16.mxu0 0
    %246 = vmatpush1.bf16.msra.mxu0 0
    %247 = vmatprep.subr.bf16.mxu0 0
    %248 = vmatpush1.bf16.msra.mxu0 0
    %249 = vmatprep.subr.bf16.mxu0 0
    %250 = vmatpush1.bf16.msra.mxu0 0
    %251 = vmatprep.subr.bf16.mxu0 0
    %252 = vmatpush1.bf16.msra.mxu0 0
    %253 = vmatprep.subr.bf16.mxu0 0
    %254 = vmatpush1.bf16.msra.mxu0 0
    %255 = vmatprep.mubr.bf16.mxu0 0
    %256 = vmatmul.mubr.bf16.gmra.mrb[0].mxu0 %v151
    %v257 = vpop.f32.mrb[0].mxu0
    %v258 = vadd.f32 %v173, %v257
    %v259 = vpop.f32.mrb[0].mxu0
    %v260 = vpop.f32.mrb[0].mxu0
    %v261 = vadd.f32 %v173, %v260
    %v262 = vpop.f32.mrb[0].mxu0
    %263 = vdwg.mxu0
    %v264 = vpack.c.bf16 %v261, %v258
    %v265 = vmax.bf16 %v264, 0
    %v266 = vld [vmem:[#allocation8] sm:$0xf]
    %v267 = vld [vmem:[#allocation8 + $0x4] sm:$0xf]
    %v268 = vld [vmem:[#allocation8 + $0x8] sm:$0xf]
    %v269 = vld [vmem:[#allocation8 + $0xc] sm:$0xf]
    %v270 = vld [vmem:[#allocation8 + $0x10] sm:$0xf]
    %v271 = vld [vmem:[#allocation8 + $0x14] sm:$0xf]
    %v272 = vld [vmem:[#allocation8 + $0x18] sm:$0xf]
    %v273 = vld [vmem:[#allocation8 + $0x1c] sm:$0xf]
    %v274 = vld [vmem:[#allocation8 + $0x20] sm:$0xf]
    %v275 = vld [vmem:[#allocation8 + $0x24] sm:$0xf]
    %v276 = vld [vmem:[#allocation8 + $0x28] sm:$0xf]
    %v277 = vld [vmem:[#allocation8 + $0x2c] sm:$0xf]
    %v278 = vld [vmem:[#allocation8 + $0x30] sm:$0xf]
    %v279 = vld [vmem:[#allocation8 + $0x34] sm:$0xf]
    %v280 = vld [vmem:[#allocation8 + $0x38] sm:$0xf]
    %v281 = vld [vmem:[#allocation8 + $0x3c] sm:$0xf]
    %v282 = vld [vmem:[%s6] sm:$0x1]
    %v284 = vlaneseq
    %v285 = vshrl.u32 %v284, 7
    %v286 = vsub.s32 0, %v285
    %v287 = vrot.slane %v282, %v286
    %v305 = vunpack.c.l.b16 %v266
    %v306 = vunpack.c.l.b16 %v267
    %v307 = vunpack.c.l.b16 %v268
    %v308 = vunpack.c.l.b16 %v269
    %v309 = vunpack.c.l.b16 %v270
    %v310 = vunpack.c.l.b16 %v271
    %v311 = vunpack.c.l.b16 %v272
    %v312 = vunpack.c.l.b16 %v273
    %v313 = vunpack.c.l.b16 %v274
    %v314 = vunpack.c.l.b16 %v275
    %v315 = vunpack.c.l.b16 %v276
    %v316 = vunpack.c.l.b16 %v277
    %v317 = vunpack.c.l.b16 %v278
    %v318 = vunpack.c.l.b16 %v279
    %v319 = vunpack.c.l.b16 %v280
    %v320 = vunpack.c.l.b16 %v281
    %v321 = vpack.c.b16 %v306, %v305
    %v322 = vpack.c.b16 %v308, %v307
    %v323 = vpack.c.b16 %v310, %v309
    %v324 = vpack.c.b16 %v312, %v311
    %v325 = vpack.c.b16 %v314, %v313
    %v326 = vpack.c.b16 %v316, %v315
    %v327 = vpack.c.b16 %v318, %v317
    %v328 = vpack.c.b16 %v320, %v319
    %337 = vmatprep.subr.bf16.mxu0 0
    %338 = vmatpush1.bf16.msra.mxu0 %v321
    %339 = vmatprep.subr.bf16.mxu0 0
    %340 = vmatpush1.bf16.msra.mxu0 %v322
    %341 = vmatprep.subr.bf16.mxu0 0
    %342 = vmatpush1.bf16.msra.mxu0 %v323
    %343 = vmatprep.subr.bf16.mxu0 0
    %344 = vmatpush1.bf16.msra.mxu0 %v324
    %345 = vmatprep.subr.bf16.mxu0 0
    %346 = vmatpush1.bf16.msra.mxu0 %v325
    %347 = vmatprep.subr.bf16.mxu0 0
    %348 = vmatpush1.bf16.msra.mxu0 %v326
    %349 = vmatprep.subr.bf16.mxu0 0
    %350 = vmatpush1.bf16.msra.mxu0 %v327
    %351 = vmatprep.subr.bf16.mxu0 0
    %352 = vmatpush1.bf16.msra.mxu0 %v328
    %353 = vmatprep.subr.bf16.mxu0 0
    %354 = vmatpush1.bf16.msra.mxu0 0
    %355 = vmatprep.subr.bf16.mxu0 0
    %356 = vmatpush1.bf16.msra.mxu0 0
    %357 = vmatprep.subr.bf16.mxu0 0
    %358 = vmatpush1.bf16.msra.mxu0 0
    %359 = vmatprep.subr.bf16.mxu0 0
    %360 = vmatpush1.bf16.msra.mxu0 0
    %361 = vmatprep.subr.bf16.mxu0 0
    %362 = vmatpush1.bf16.msra.mxu0 0
    %363 = vmatprep.subr.bf16.mxu0 0
    %364 = vmatpush1.bf16.msra.mxu0 0
    %365 = vmatprep.subr.bf16.mxu0 0
    %366 = vmatpush1.bf16.msra.mxu0 0
    %367 = vmatprep.subr.bf16.mxu0 0
    %368 = vmatpush1.bf16.msra.mxu0 0
    %369 = vmatprep.mubr.bf16.mxu0 0
    %370 = vmatmul.mubr.bf16.gmra.mrb[0].mxu0 %v265
    %v371 = vpop.f32.mrb[0].mxu0
    %v372 = vadd.f32 %v287, %v371
    %v373 = vpop.f32.mrb[0].mxu0
    %v374 = vpop.f32.mrb[0].mxu0
    %v375 = vadd.f32 %v287, %v374
    %v376 = vpop.f32.mrb[0].mxu0
    %377 = vdwg.mxu0
    %v378 = vtanh.pop %v372
    %v379 = vtanh.pop %v375
    %380 = vst [vmem:[#allocation10] sm:$0xff] %v378
    %381 = vst [vmem:[#allocation10 + $0x8] sm:$0xff] %v379
    // Predicated region
    $region46: #{tpu_custom_call.1} parent=1 // pred_check
      _
    $region47: #{tpu_custom_call.1} parent=1 // pred_check_branch
      %383 = sbr.rel (0) target = $region49
    $region48: #{tpu_custom_call.1} parent=1 // pred_region
      %s385 = ssub.s32 256, 256
      %386 = vsyncadd [#allocation4], %s385
      %s387 = sshll.u32 [#allocation10], 4
      %s388 = int_to_ptr.vmem [resolvable:$true] %s387
      %393 = dma.vmem_to_hbm [thread:$0]  %s388, 256, %s7, [#allocation4], 128, 128, 8
    $region49: #{tpu_custom_call.1} parent=1 // pred_fallthru
      _
    // Predicated region
    $region50: #{tpu_custom_call.1} parent=1 // pred_check
      _
    $region51: #{tpu_custom_call.1} parent=1 // pred_check_branch
      %395 = sbr.rel (0) target = $region53
    $region52: #{tpu_custom_call.1} parent=1 // pred_region
      %396 = dma.done [#allocation4], 256
    $region53: #{tpu_custom_call.1} parent=1 // pred_fallthru
      _
    %397 = vsyncpa [#allocation3], 1
    %398 = vsyncpa [#allocation6], 1
    %399 = vsyncpa [#allocation9], 1
    %400 = vsyncpa [#allocation4], 1

// kernel: tpu_custom_call.1
$region0: #{tpu_custom_call.1}
  #allocation0 [shape = 'u32[]', space=smem, size = 0x4, offset = 0x4, fixed_abs, tag = 'smem constant byte address 0x4 - core index']
  #allocation1 [shape = 'u32[144,128]{1,0:T(1,128)}', space=vmem, size = 0x12000, scoped, tag = 'internal scratch']
  %s0 = inlined_call_operand.hbm [shape: bf16[16,16], index: 0, kind: input, shape index: {}]
  %s1 = inlined_call_operand.hbm [shape: bf16[16,128], index: 1, kind: input, shape index: {}]
  %s2 = inlined_call_operand.vmem [shape: f32[1,128], index: 2, kind: input, shape index: {}]
  %s3 = inlined_call_operand.hbm [shape: bf16[128,128], index: 3, kind: input, shape index: {}]
  %s4 = inlined_call_operand.vmem [shape: f32[1,128], index: 4, kind: input, shape index: {}]
  %s5 = inlined_call_operand.hbm [shape: bf16[128,128], index: 5, kind: input, shape index: {}]
  %s6 = inlined_call_operand.vmem [shape: f32[1,128], index: 6, kind: input, shape index: {}]
  %s7 = inlined_call_operand.hbm [shape: f32[16,128], index: 7, kind: output, shape index: {}]
  %s8 = sld [smem:[#allocation0]]
  $region54: #{tpu_custom_call.1} parent=0
    _
  %s10 = ssub.s32 1, %s8
  %s11 = scalar_select 0, %s10, %s8
  $region1: #{tpu_custom_call.1} parent=0
    #allocation2 [shape = 'u8[4096]{0}', space=vmem, size = 0x1000, scoped, tag = 'input window, operand 0, single buffered']
    #allocation3 [shape = 's32[1]{0}', space=sflag, size = 0x4, scoped, tag = 'scoped memory for tpu_custom_call.1']
    #allocation4 [shape = 's32[1]{0}', space=sflag, size = 0x4, scoped, tag = 'scoped memory for tpu_custom_call.1']
    #allocation5 [shape = 'u8[4096]{0}', space=vmem, size = 0x1000, scoped, tag = 'input window, operand 1, single buffered']
    #allocation6 [shape = 's32[1]{0}', space=sflag, size = 0x4, scoped, tag = 'scoped memory for tpu_custom_call.1']
    #allocation7 [shape = 'u8[32768]{0}', space=vmem, size = 0x8000, scoped, tag = 'input window, operand 3, single buffered']
    #allocation8 [shape = 'u8[32768]{0}', space=vmem, size = 0x8000, scoped, tag = 'input window, operand 5, single buffered']
    #allocation9 [shape = 's32[1]{0}', space=sflag, size = 0x4, scoped, tag = 'scoped memory for tpu_custom_call.1']
    #allocation10 [shape = 'u8[8192]{0}', space=vmem, size = 0x2000, scoped, tag = 'output window, operand 0, single buffered']
    %12 = vsyncpa [#allocation3], 0
    %13 = vsyncpa [#allocation6], 0
    %14 = vsyncpa [#allocation9], 0
    %15 = vsyncpa [#allocation4], 0
    // Predicated region
    $region2: #{tpu_custom_call.1} parent=1 // pred_check
      _
    $region3: #{tpu_custom_call.1} parent=1 // pred_check_branch
      %17 = sbr.rel (0) target = $region5
    $region4: #{tpu_custom_call.1} parent=1 // pred_region
      %s19 = ssub.s32 128, 128
      %20 = vsyncadd [#allocation3], %s19
      %s21 = sshll.u32 [#allocation2], 4
      %s22 = int_to_ptr.vmem [resolvable:$true] %s21
      %27 = dma.hbm_to_vmem [thread:$0]  %s0, 128, %s22, [#allocation3], 64, 64, 4
    $region5: #{tpu_custom_call.1} parent=1 // pred_fallthru
      _
    // Predicated region
    $region6: #{tpu_custom_call.1} parent=1 // pred_check
      _
    $region7: #{tpu_custom_call.1} parent=1 // pred_check_branch
      %29 = sbr.rel (0) target = $region9
    $region8: #{tpu_custom_call.1} parent=1 // pred_region
      %s31 = ssub.s32 128, 128
      %32 = vsyncadd [#allocation6], %s31
      %s33 = sshll.u32 [#allocation5], 4
      %s34 = int_to_ptr.vmem [resolvable:$true] %s33
      %39 = dma.hbm_to_vmem [thread:$0]  %s1, 128, %s34, [#allocation6], 64, 64, 4
    $region9: #{tpu_custom_call.1} parent=1 // pred_fallthru
      _
    // Predicated region
    $region10: #{tpu_custom_call.1} parent=1 // pred_check
      _
    $region11: #{tpu_custom_call.1} parent=1 // pred_check_branch
      %41 = sbr.rel (0) target = $region13
    $region12: #{tpu_custom_call.1} parent=1 // pred_region
      _
    $region13: #{tpu_custom_call.1} parent=1 // pred_fallthru
      _
    // Predicated region
    $region14: #{tpu_custom_call.1} parent=1 // pred_check
      _
    $region15: #{tpu_custom_call.1} parent=1 // pred_check_branch
      %43 = sbr.rel (0) target = $region17
    $region16: #{tpu_custom_call.1} parent=1 // pred_region
      %s45 = ssub.s32 1024, 1024
      %46 = vsyncadd [#allocation6], %s45
      %s47 = sshll.u32 [#allocation7], 4
      %s48 = int_to_ptr.vmem [resolvable:$true] %s47
      %53 = dma.hbm_to_vmem [thread:$0]  %s3, 1024, %s48, [#allocation6], 64, 64, 4
    $region17: #{tpu_custom_call.1} parent=1 // pred_fallthru
      _
    // Predicated region
    $region18: #{tpu_custom_call.1} parent=1 // pred_check
      _
    $region19: #{tpu_custom_call.1} parent=1 // pred_check_branch
      %55 = sbr.rel (0) target = $region21
    $region20: #{tpu_custom_call.1} parent=1 // pred_region
      _
    $region21: #{tpu_custom_call.1} parent=1 // pred_fallthru
      _
    // Predicated region
    $region22: #{tpu_custom_call.1} parent=1 // pred_check
      _
    $region23: #{tpu_custom_call.1} parent=1 // pred_check_branch
      %57 = sbr.rel (0) target = $region25
    $region24: #{tpu_custom_call.1} parent=1 // pred_region
      %s59 = ssub.s32 1024, 1024
      %60 = vsyncadd [#allocation9], %s59
      %s61 = sshll.u32 [#allocation8], 4
      %s62 = int_to_ptr.vmem [resolvable:$true] %s61
      %67 = dma.hbm_to_vmem [thread:$0]  %s5, 1024, %s62, [#allocation9], 64, 64, 4
    $region25: #{tpu_custom_call.1} parent=1 // pred_fallthru
      _
    // Predicated region
    $region26: #{tpu_custom_call.1} parent=1 // pred_check
      _
    $region27: #{tpu_custom_call.1} parent=1 // pred_check_branch
      %69 = sbr.rel (0) target = $region29
    $region28: #{tpu_custom_call.1} parent=1 // pred_region
      _
    $region29: #{tpu_custom_call.1} parent=1 // pred_fallthru
      _
    // Predicated region
    $region30: #{tpu_custom_call.1} parent=1 // pred_check
      _
    $region31: #{tpu_custom_call.1} parent=1 // pred_check_branch
      %71 = sbr.rel (0) target = $region33
    $region32: #{tpu_custom_call.1} parent=1 // pred_region
      %72 = dma.done [#allocation3], 128
    $region33: #{tpu_custom_call.1} parent=1 // pred_fallthru
      _
    // Predicated region
    $region34: #{tpu_custom_call.1} parent=1 // pred_check
      _
    $region35: #{tpu_custom_call.1} parent=1 // pred_check_branch
      %74 = sbr.rel (0) target = $region37
    $region36: #{tpu_custom_call.1} parent=1 // pred_region
      %75 = dma.done [#allocation6], 128
    $region37: #{tpu_custom_call.1} parent=1 // pred_fallthru
      _
    // Predicated region
    $region38: #{tpu_custom_call.1} parent=1 // pred_check
      _
    $region39: #{tpu_custom_call.1} parent=1 // pred_check_branch
      %77 = sbr.rel (0) target = $region41
    $region40: #{tpu_custom_call.1} parent=1 // pred_region
      %78 = dma.done [#allocation6], 1024
    $region41: #{tpu_custom_call.1} parent=1 // pred_fallthru
      _
    // Predicated region
    $region42: #{tpu_custom_call.1} parent=1 // pred_check
      _
    $region43: #{tpu_custom_call.1} parent=1 // pred_check_branch
      %80 = sbr.rel (0) target = $region45
    $region44: #{tpu_custom_call.1} parent=1 // pred_region
      %81 = dma.done [#allocation9], 1024
    $region45: #{tpu_custom_call.1} parent=1 // pred_fallthru
      _
    %v83 = vld [vmem:[#allocation2] sm:$0xf]
    %v84 = vld [vmem:[#allocation2 + $0x4] sm:$0xf]
    %v85 = vld [vmem:[#allocation5] sm:$0xf]
    %v86 = vld [vmem:[#allocation5 + $0x4] sm:$0xf]
    %v87 = vld [vmem:[%s2] sm:$0x1]
    %v89 = vlaneseq
    %v90 = vshrl.u32 %v89, 7
    %v91 = vsub.s32 0, %v90
    %v92 = vrot.slane %v87, %v91
    %v96 = vunpack.c.l.b16 %v83
    %v97 = vunpack.c.l.b16 %v84
    %v98 = vpack.c.b16 %v97, %v96
    %v101 = vunpack.c.l.b16 %v85
    %v102 = vunpack.c.l.b16 %v86
    %v103 = vpack.c.b16 %v102, %v101
    %vm105 = vcmask 130048
    %v107 = vsel %vm105, %v98, 0
    %109 = vmatprep.subr.bf16.mxu0 0
    %110 = vmatpush1.bf16.msra.mxu0 %v103
    %111 = vmatprep.subr.bf16.mxu0 0
    %112 = vmatpush1.bf16.msra.mxu0 0
    %113 = vmatprep.subr.bf16.mxu0 0
    %114 = vmatpush1.bf16.msra.mxu0 0
    %115 = vmatprep.subr.bf16.mxu0 0
    %116 = vmatpush1.bf16.msra.mxu0 0
    %117 = vmatprep.subr.bf16.mxu0 0
    %118 = vmatpush1.bf16.msra.mxu0 0
    %119 = vmatprep.subr.bf16.mxu0 0
    %120 = vmatpush1.bf16.msra.mxu0 0
    %121 = vmatprep.subr.bf16.mxu0 0
    %122 = vmatpush1.bf16.msra.mxu0 0
    %123 = vmatprep.subr.bf16.mxu0 0
    %124 = vmatpush1.bf16.msra.mxu0 0
    %125 = vmatprep.subr.bf16.mxu0 0
    %126 = vmatpush1.bf16.msra.mxu0 0
    %127 = vmatprep.subr.bf16.mxu0 0
    %128 = vmatpush1.bf16.msra.mxu0 0
    %129 = vmatprep.subr.bf16.mxu0 0
    %130 = vmatpush1.bf16.msra.mxu0 0
    %131 = vmatprep.subr.bf16.mxu0 0
    %132 = vmatpush1.bf16.msra.mxu0 0
    %133 = vmatprep.subr.bf16.mxu0 0
    %134 = vmatpush1.bf16.msra.mxu0 0
    %135 = vmatprep.subr.bf16.mxu0 0
    %136 = vmatpush1.bf16.msra.mxu0 0
    %137 = vmatprep.subr.bf16.mxu0 0
    %138 = vmatpush1.bf16.msra.mxu0 0
    %139 = vmatprep.subr.bf16.mxu0 0
    %140 = vmatpush1.bf16.msra.mxu0 0
    %141 = vmatprep.mubr.bf16.mxu0 0
    %142 = vmatmul.mubr.bf16.gmra.mrb[0].mxu0 %v107
    %v143 = vpop.f32.mrb[0].mxu0
    %v144 = vadd.f32 %v92, %v143
    %v145 = vpop.f32.mrb[0].mxu0
    %v146 = vpop.f32.mrb[0].mxu0
    %v147 = vadd.f32 %v92, %v146
    %v148 = vpop.f32.mrb[0].mxu0
    %149 = vdwg.mxu0
    %v150 = vpack.c.bf16 %v147, %v144
    %v151 = vmax.bf16 %v150, 0
    %v152 = vld [vmem:[#allocation7] sm:$0xf]
    %v153 = vld [vmem:[#allocation7 + $0x4] sm:$0xf]
    %v154 = vld [vmem:[#allocation7 + $0x8] sm:$0xf]
    %v155 = vld [vmem:[#allocation7 + $0xc] sm:$0xf]
    %v156 = vld [vmem:[#allocation7 + $0x10] sm:$0xf]
    %v157 = vld [vmem:[#allocation7 + $0x14] sm:$0xf]
    %v158 = vld [vmem:[#allocation7 + $0x18] sm:$0xf]
    %v159 = vld [vmem:[#allocation7 + $0x1c] sm:$0xf]
    %v160 = vld [vmem:[#allocation7 + $0x20] sm:$0xf]
    %v161 = vld [vmem:[#allocation7 + $0x24] sm:$0xf]
    %v162 = vld [vmem:[#allocation7 + $0x28] sm:$0xf]
    %v163 = vld [vmem:[#allocation7 + $0x2c] sm:$0xf]
    %v164 = vld [vmem:[#allocation7 + $0x30] sm:$0xf]
    %v165 = vld [vmem:[#allocation7 + $0x34] sm:$0xf]
    %v166 = vld [vmem:[#allocation7 + $0x38] sm:$0xf]
    %v167 = vld [vmem:[#allocation7 + $0x3c] sm:$0xf]
    %v168 = vld [vmem:[%s4] sm:$0x1]
    %v170 = vlaneseq
    %v171 = vshrl.u32 %v170, 7
    %v172 = vsub.s32 0, %v171
    %v173 = vrot.slane %v168, %v172
    %v191 = vunpack.c.l.b16 %v152
    %v192 = vunpack.c.l.b16 %v153
    %v193 = vunpack.c.l.b16 %v154
    %v194 = vunpack.c.l.b16 %v155
    %v195 = vunpack.c.l.b16 %v156
    %v196 = vunpack.c.l.b16 %v157
    %v197 = vunpack.c.l.b16 %v158
    %v198 = vunpack.c.l.b16 %v159
    %v199 = vunpack.c.l.b16 %v160
    %v200 = vunpack.c.l.b16 %v161
    %v201 = vunpack.c.l.b16 %v162
    %v202 = vunpack.c.l.b16 %v163
    %v203 = vunpack.c.l.b16 %v164
    %v204 = vunpack.c.l.b16 %v165
    %v205 = vunpack.c.l.b16 %v166
    %v206 = vunpack.c.l.b16 %v167
    %v207 = vpack.c.b16 %v192, %v191
    %v208 = vpack.c.b16 %v194, %v193
    %v209 = vpack.c.b16 %v196, %v195
    %v210 = vpack.c.b16 %v198, %v197
    %v211 = vpack.c.b16 %v200, %v199
    %v212 = vpack.c.b16 %v202, %v201
    %v213 = vpack.c.b16 %v204, %v203
    %v214 = vpack.c.b16 %v206, %v205
    %223 = vmatprep.subr.bf16.mxu0 0
    %224 = vmatpush1.bf16.msra.mxu0 %v207
    %225 = vmatprep.subr.bf16.mxu0 0
    %226 = vmatpush1.bf16.msra.mxu0 %v208
    %227 = vmatprep.subr.bf16.mxu0 0
    %228 = vmatpush1.bf16.msra.mxu0 %v209
    %229 = vmatprep.subr.bf16.mxu0 0
    %230 = vmatpush1.bf16.msra.mxu0 %v210
    %231 = vmatprep.subr.bf16.mxu0 0
    %232 = vmatpush1.bf16.msra.mxu0 %v211
    %233 = vmatprep.subr.bf16.mxu0 0
    %234 = vmatpush1.bf16.msra.mxu0 %v212
    %235 = vmatprep.subr.bf16.mxu0 0
    %236 = vmatpush1.bf16.msra.mxu0 %v213
    %237 = vmatprep.subr.bf16.mxu0 0
    %238 = vmatpush1.bf16.msra.mxu0 %v214
    %239 = vmatprep.subr.bf16.mxu0 0
    %240 = vmatpush1.bf16.msra.mxu0 0
    %241 = vmatprep.subr.bf16.mxu0 0
    %242 = vmatpush1.bf16.msra.mxu0 0
    %243 = vmatprep.subr.bf16.mxu0 0
    %244 = vmatpush1.bf16.msra.mxu0 0
    %245 = vmatprep.subr.bf16.mxu0 0
    %246 = vmatpush1.bf16.msra.mxu0 0
    %247 = vmatprep.subr.bf16.mxu0 0
    %248 = vmatpush1.bf16.msra.mxu0 0
    %249 = vmatprep.subr.bf16.mxu0 0
    %250 = vmatpush1.bf16.msra.mxu0 0
    %251 = vmatprep.subr.bf16.mxu0 0
    %252 = vmatpush1.bf16.msra.mxu0 0
    %253 = vmatprep.subr.bf16.mxu0 0
    %254 = vmatpush1.bf16.msra.mxu0 0
    %255 = vmatprep.mubr.bf16.mxu0 0
    %256 = vmatmul.mubr.bf16.gmra.mrb[0].mxu0 %v151
    %v257 = vpop.f32.mrb[0].mxu0
    %v258 = vadd.f32 %v173, %v257
    %v259 = vpop.f32.mrb[0].mxu0
    %v260 = vpop.f32.mrb[0].mxu0
    %v261 = vadd.f32 %v173, %v260
    %v262 = vpop.f32.mrb[0].mxu0
    %263 = vdwg.mxu0
    %v264 = vpack.c.bf16 %v261, %v258
    %v265 = vmax.bf16 %v264, 0
    %v266 = vld [vmem:[#allocation8] sm:$0xf]
    %v267 = vld [vmem:[#allocation8 + $0x4] sm:$0xf]
    %v268 = vld [vmem:[#allocation8 + $0x8] sm:$0xf]
    %v269 = vld [vmem:[#allocation8 + $0xc] sm:$0xf]
    %v270 = vld [vmem:[#allocation8 + $0x10] sm:$0xf]
    %v271 = vld [vmem:[#allocation8 + $0x14] sm:$0xf]
    %v272 = vld [vmem:[#allocation8 + $0x18] sm:$0xf]
    %v273 = vld [vmem:[#allocation8 + $0x1c] sm:$0xf]
    %v274 = vld [vmem:[#allocation8 + $0x20] sm:$0xf]
    %v275 = vld [vmem:[#allocation8 + $0x24] sm:$0xf]
    %v276 = vld [vmem:[#allocation8 + $0x28] sm:$0xf]
    %v277 = vld [vmem:[#allocation8 + $0x2c] sm:$0xf]
    %v278 = vld [vmem:[#allocation8 + $0x30] sm:$0xf]
    %v279 = vld [vmem:[#allocation8 + $0x34] sm:$0xf]
    %v280 = vld [vmem:[#allocation8 + $0x38] sm:$0xf]
    %v281 = vld [vmem:[#allocation8 + $0x3c] sm:$0xf]
    %v282 = vld [vmem:[%s6] sm:$0x1]
    %v284 = vlaneseq
    %v285 = vshrl.u32 %v284, 7
    %v286 = vsub.s32 0, %v285
    %v287 = vrot.slane %v282, %v286
    %v305 = vunpack.c.l.b16 %v266
    %v306 = vunpack.c.l.b16 %v267
    %v307 = vunpack.c.l.b16 %v268
    %v308 = vunpack.c.l.b16 %v269
    %v309 = vunpack.c.l.b16 %v270
    %v310 = vunpack.c.l.b16 %v271
    %v311 = vunpack.c.l.b16 %v272
    %v312 = vunpack.c.l.b16 %v273
    %v313 = vunpack.c.l.b16 %v274
    %v314 = vunpack.c.l.b16 %v275
    %v315 = vunpack.c.l.b16 %v276
    %v316 = vunpack.c.l.b16 %v277
    %v317 = vunpack.c.l.b16 %v278
    %v318 = vunpack.c.l.b16 %v279
    %v319 = vunpack.c.l.b16 %v280
    %v320 = vunpack.c.l.b16 %v281
    %v321 = vpack.c.b16 %v306, %v305
    %v322 = vpack.c.b16 %v308, %v307
    %v323 = vpack.c.b16 %v310, %v309
    %v324 = vpack.c.b16 %v312, %v311
    %v325 = vpack.c.b16 %v314, %v313
    %v326 = vpack.c.b16 %v316, %v315
    %v327 = vpack.c.b16 %v318, %v317
    %v328 = vpack.c.b16 %v320, %v319
    %337 = vmatprep.subr.bf16.mxu0 0
    %338 = vmatpush1.bf16.msra.mxu0 %v321
    %339 = vmatprep.subr.bf16.mxu0 0
    %340 = vmatpush1.bf16.msra.mxu0 %v322
    %341 = vmatprep.subr.bf16.mxu0 0
    %342 = vmatpush1.bf16.msra.mxu0 %v323
    %343 = vmatprep.subr.bf16.mxu0 0
    %344 = vmatpush1.bf16.msra.mxu0 %v324
    %345 = vmatprep.subr.bf16.mxu0 0
    %346 = vmatpush1.bf16.msra.mxu0 %v325
    %347 = vmatprep.subr.bf16.mxu0 0
    %348 = vmatpush1.bf16.msra.mxu0 %v326
    %349 = vmatprep.subr.bf16.mxu0 0
    %350 = vmatpush1.bf16.msra.mxu0 %v327
    %351 = vmatprep.subr.bf16.mxu0 0
    %352 = vmatpush1.bf16.msra.mxu0 %v328
    %353 = vmatprep.subr.bf16.mxu0 0
    %354 = vmatpush1.bf16.msra.mxu0 0
    %355 = vmatprep.subr.bf16.mxu0 0
    %356 = vmatpush1.bf16.msra.mxu0 0
    %357 = vmatprep.subr.bf16.mxu0 0
    %358 = vmatpush1.bf16.msra.mxu0 0
    %359 = vmatprep.subr.bf16.mxu0 0
    %360 = vmatpush1.bf16.msra.mxu0 0
    %361 = vmatprep.subr.bf16.mxu0 0
    %362 = vmatpush1.bf16.msra.mxu0 0
    %363 = vmatprep.subr.bf16.mxu0 0
    %364 = vmatpush1.bf16.msra.mxu0 0
    %365 = vmatprep.subr.bf16.mxu0 0
    %366 = vmatpush1.bf16.msra.mxu0 0
    %367 = vmatprep.subr.bf16.mxu0 0
    %368 = vmatpush1.bf16.msra.mxu0 0
    %369 = vmatprep.mubr.bf16.mxu0 0
    %370 = vmatmul.mubr.bf16.gmra.mrb[0].mxu0 %v265
    %v371 = vpop.f32.mrb[0].mxu0
    %v372 = vadd.f32 %v287, %v371
    %v373 = vpop.f32.mrb[0].mxu0
    %v374 = vpop.f32.mrb[0].mxu0
    %v375 = vadd.f32 %v287, %v374
    %v376 = vpop.f32.mrb[0].mxu0
    %377 = vdwg.mxu0
    %v378 = vtanh.pop %v372
    %v379 = vtanh.pop %v375
    %380 = vst [vmem:[#allocation10] sm:$0xff] %v378
    %381 = vst [vmem:[#allocation10 + $0x8] sm:$0xff] %v379
    // Predicated region
    $region46: #{tpu_custom_call.1} parent=1 // pred_check
      _
    $region47: #{tpu_custom_call.1} parent=1 // pred_check_branch
      %383 = sbr.rel (0) target = $region49
    $region48: #{tpu_custom_call.1} parent=1 // pred_region
      %s385 = ssub.s32 256, 256
      %386 = vsyncadd [#allocation4], %s385
      %s387 = sshll.u32 [#allocation10], 4
      %s388 = int_to_ptr.vmem [resolvable:$true] %s387
      %393 = dma.vmem_to_hbm [thread:$0]  %s388, 256, %s7, [#allocation4], 128, 128, 8
    $region49: #{tpu_custom_call.1} parent=1 // pred_fallthru
      _
    // Predicated region
    $region50: #{tpu_custom_call.1} parent=1 // pred_check
      _
    $region51: #{tpu_custom_call.1} parent=1 // pred_check_branch
      %395 = sbr.rel (0) target = $region53
    $region52: #{tpu_custom_call.1} parent=1 // pred_region
      %396 = dma.done [#allocation4], 256
    $region53: #{tpu_custom_call.1} parent=1 // pred_fallthru
      _
    %397 = vsyncpa [#allocation3], 1
    %398 = vsyncpa [#allocation6], 1
    %399 = vsyncpa [#allocation9], 1
    %400 = vsyncpa [#allocation4], 1

</llo_original>
